<compile_context>
chip_gen: v5e
topology: v5e:2x2
jax: 0.10.0
libtpu: 0.0.40
codegen_flags: <defaults>
</compile_context>

<pallas_src>
import functools

import jax
import jax.numpy as jnp
from jax import lax
from jax.experimental import pallas as pl
from jax.experimental.pallas import tpu as pltpu

SIGMA_MIN = 0.002
SIGMA_DATA = 0.5


def ct_precond_kernel(xin_ref,   # VMEM (Bt, Kp) f32  fused [x | sigma | 1 | ret | 0]
                      w_in_ref,  # VMEM (Kp, Np) cdt  fused [W1bd ; Ws ; b1 ; Wr ; 0]
                      w2_ref,    # VMEM (Np, HD) cdt  block-diag kron(I_H, W2)
                      b2_ref,    # VMEM (1, HD)  f32  lane-tiled bias
                      out_ref,   # VMEM (Bt, HD)
                      *, hd):
    xin = xin_ref[...]                     # (Bt, Kp) f32
    cdt = w_in_ref.dtype                   # matmul operand dtype (bf16 or f32)

    # ---- synthetic returns-conditioned net, horizon folded into lanes:
    #      one fused dot = x@W1 + returns@Wr + sigma*Ws + b1 ----
    h = jnp.dot(xin.astype(cdt), w_in_ref[...],
                preferred_element_type=jnp.float32)          # (Bt, Np) f32
    f_x = (jnp.dot(jnp.tanh(h).astype(cdt), w2_ref[...],
                   preferred_element_type=jnp.float32)
           + b2_ref[...])                                    # (Bt, HD) f32

    # ---- consistency-model scalings (get_scalings), per-row vectors ----
    x = xin[:, :hd]                        # lane-aligned slice: first HD columns
    sig = xin[:, hd:hd + 1]                # sigma column (tile-aligned at HD)

    sm = sig - SIGMA_MIN
    den = sm * sm + SIGMA_DATA * SIGMA_DATA          # >= SIGMA_DATA^2 = 0.25
    inv = pl.reciprocal(den, approx=True)            # EUP slot (overlaps MXU/VPU)
    inv = inv * (2.0 - den * inv)                    # one Newton step -> ~f32 ulp
    c_skip = (SIGMA_DATA * SIGMA_DATA) * inv
    c_out = SIGMA_DATA * sm * lax.rsqrt(sig * sig + SIGMA_DATA * SIGMA_DATA)
    # c_in / c_noise are computed by get_scalings but unused by forward.

    out_ref[...] = (c_out * f_x + c_skip * x).astype(out_ref.dtype)


def fold_ct_params(params, H, compute_dtype=jnp.bfloat16):
    """Fold the horizon into lanes and stack the conditioning into one K dim.

    Called ONCE (outside the sampling loop); the result is reused every forward.
    Returns f32 bias + compute_dtype matmul weights:
      w_in : (Kp, Np)  rows = [kron(I_H,W1) ; Ws ; b1 ; Wr ; 0-pad]
      w2   : (Np, HD)  kron(I_H, W2), zero rows for the N padding
      b2   : (1, HD)
    """
    D, Hd = params["w1"].shape
    R = params["wr"].shape[0]
    HD, N = H * D, H * Hd
    Np = ((N + 127) // 128) * 128          # keep hidden stores / 2nd dot unmasked
    K = HD + 2 + R                         # [x | sigma | 1 | returns]
    Kp = ((K + 7) // 8) * 8                # sublane-friendly contraction dim

    eye = jnp.eye(H, dtype=jnp.float32)
    w1b = jnp.kron(eye, params["w1"].astype(jnp.float32))   # (HD, N) block-diag
    wrb = jnp.tile(params["wr"].astype(jnp.float32), (1, H))  # (R, N)
    wsb = jnp.tile(params["ws"].astype(jnp.float32), (1, H))  # (1, N)
    b1b = jnp.tile(params["b1"].astype(jnp.float32), (1, H))  # (1, N)
    w2b = jnp.kron(eye, params["w2"].astype(jnp.float32))   # (N, HD) block-diag
    b2b = jnp.tile(params["b2"].astype(jnp.float32), (1, H))  # (1, HD)

    w_in = jnp.zeros((Kp, Np), jnp.float32)
    w_in = w_in.at[:HD, :N].set(w1b)
    w_in = w_in.at[HD, :N].set(wsb[0])
    w_in = w_in.at[HD + 1, :N].set(b1b[0])
    w_in = w_in.at[HD + 2:HD + 2 + R, :N].set(wrb)
    w2p = jnp.zeros((Np, HD), jnp.float32).at[:N, :].set(w2b)

    return {
        "w_in": w_in.astype(compute_dtype),
        "w2": w2p.astype(compute_dtype),
        "b2": b2b,                         # stays f32
    }


def _choose_block_b(B, target=512):
    """Largest multiple-of-8 divisor of B up to `target` rows.

    Small batches (B <= target) use a single chunk / grid=(1,): splitting a tiny
    batch into M=8 chunks only pays MXU fill latency and per-step overhead.
    Large batches get >=128/256-row chunks (MXU M-fill) while keeping >=2 grid
    steps so v7x's two TensorCores both get work via dimension_semantics.
    """
    if B <= target:
        return B
    bb = (target // 8) * 8
    while bb >= 8:
        if B % bb == 0:
            return bb
        bb -= 8
    # TODO(synk): pad B instead of one giant chunk if B ever gets huge and odd.
    return B


def ct_precond(x, sigma, returns, folded, *, block_b=None):
    """CTPrecond.forward:  c_out * net(x, sigma, returns) + c_skip * x."""
    B, H, D = x.shape
    HD = H * D
    R = returns.shape[-1]
    w_in, w2, b2 = folded["w_in"], folded["w2"], folded["b2"]
    Kp, Np = w_in.shape
    assert w2.shape == (Np, HD) and b2.shape == (1, HD)
    assert HD + 2 + R <= Kp

    if block_b is None:
        block_b = _choose_block_b(B)
    block_b = min(block_b, B)
    assert B % block_b == 0, "block_b must divide B"
    assert block_b % 8 == 0 or block_b == B, "chunk must respect (8,128) tiling"

    # Fused, lane-dense input: [x_flat | sigma | 1 | returns | 0-pad].
    xin = jnp.concatenate(
        [x.reshape(B, HD).astype(jnp.float32),
         sigma.reshape(B, 1).astype(jnp.float32),
         jnp.ones((B, 1), jnp.float32),
         returns.reshape(B, R).astype(jnp.float32),
         jnp.zeros((B, Kp - (HD + 2 + R)), jnp.float32)],
        axis=1)

    def const2d(a):  # constant index_map -> block fetched once, reused every step
        return pl.BlockSpec(a.shape, lambda i: (0, 0))

    out_flat = pl.pallas_call(
        functools.partial(ct_precond_kernel, hd=HD),
        out_shape=jax.ShapeDtypeStruct((B, HD), x.dtype),
        grid=(B // block_b,),
        in_specs=[
            pl.BlockSpec((block_b, Kp), lambda i: (i, 0)),   # fused activations
            const2d(w_in), const2d(w2), const2d(b2),         # weights (resident)
        ],
        out_specs=pl.BlockSpec((block_b, HD), lambda i: (i, 0)),
        compiler_params=pltpu.CompilerParams(
            dimension_semantics=("parallel",)),   # megacore-shardable when grid>1
    )(xin, w_in, w2, b2)

    return out_flat.reshape(B, H, D)


def ct_precond_reference(x, sigma, returns, params):
    """Pure-JAX reference mirroring CTPrecond.forward semantics (per-step MLP)."""
    h = (jnp.einsum("bhd,dk->bhk", x, params["w1"])
         + (returns @ params["wr"])[:, None, :]
         + sigma[:, None, None] * params["ws"][None]
         + params["b1"][None])
    f_x = jnp.einsum("bhk,kd->bhd", jnp.tanh(h), params["w2"]) + params["b2"][None]

    sm = sigma - SIGMA_MIN
    c_skip = SIGMA_DATA ** 2 / (sm ** 2 + SIGMA_DATA ** 2)
    c_out = SIGMA_DATA * sm / jnp.sqrt(sigma ** 2 + SIGMA_DATA ** 2)
    c_skip = c_skip[:, None, None]   # pad_dims_like
    c_out = c_out[:, None, None]
    return c_out * f_x + c_skip * x


if __name__ == "__main__":
    # H*D = 128 -> fully lane-dense minor dim; B=16 is small, so the default
    # chunking gives a single grid step with M=16 (no tiny-M splitting).
    B, H, D, R, Hd = 16, 8, 16, 4, 32

    key = jax.random.PRNGKey(0)
    ks = jax.random.split(key, 9)
    x = jax.random.normal(ks[0], (B, H, D), jnp.float32)
    sigma = jax.random.uniform(ks[1], (B,), jnp.float32, minval=0.01, maxval=5.0)
    returns = jax.random.normal(ks[2], (B, R), jnp.float32)
    params = {
        "w1": 0.1 * jax.random.normal(ks[3], (D, Hd), jnp.float32),
        "ws": 0.1 * jax.random.normal(ks[4], (1, Hd), jnp.float32),
        "wr": 0.1 * jax.random.normal(ks[5], (R, Hd), jnp.float32),
        "b1": 0.1 * jax.random.normal(ks[6], (1, Hd), jnp.float32),
        "w2": 0.1 * jax.random.normal(ks[7], (Hd, D), jnp.float32),
        "b2": 0.1 * jax.random.normal(ks[8], (1, D), jnp.float32),
    }

    ref = ct_precond_reference(x, sigma, returns, params)

    # Weight folding hoisted out of the forward path: fold once, reuse per call.
    folded_f32 = fold_ct_params(params, H, compute_dtype=jnp.float32)
    folded_bf16 = fold_ct_params(params, H, compute_dtype=jnp.bfloat16)

    # f32 operand path: tight parity (tolerance covers approx-recip + Newton).
    out = jax.block_until_ready(ct_precond(x, sigma, returns, folded_f32))
    assert out.shape == x.shape and out.dtype == x.dtype
    assert jnp.allclose(out, ref, rtol=2e-4, atol=2e-4), "f32 mismatch vs reference"

    # bf16 MXU-operand path (recommended default on v5e/v6e/v7x).
    out_bf16 = jax.block_until_ready(ct_precond(x, sigma, returns, folded_bf16))
    assert out_bf16.shape == x.shape and out_bf16.dtype == x.dtype
    assert jnp.allclose(out_bf16, ref, rtol=5e-2, atol=5e-2), "bf16 mismatch vs reference"

    # Exercise the multi-chunk grid path (grid=(2,)); rows are independent so it
    # must agree with the single-chunk result.
    out_chunked = jax.block_until_ready(
        ct_precond(x, sigma, returns, folded_bf16, block_b=8))
    assert jnp.allclose(out_chunked, out_bf16, rtol=1e-6, atol=1e-6), "chunking mismatch"

    print("KERNEL_OK")
</pallas_src>

<mosaic_0001>
module attributes {stable_mosaic.version = 11 : i64} {
  func.func @ct_precond_kernel(%arg0: i32, %arg1: memref<16x136xf32, #tpu.memory_space<vmem>>, %arg2: memref<136x256xf32, #tpu.memory_space<vmem>>, %arg3: memref<256x128xf32, #tpu.memory_space<vmem>>, %arg4: memref<1x128xf32, #tpu.memory_space<vmem>>, %arg5: memref<16x128xf32, #tpu.memory_space<vmem>>) attributes {dimension_semantics = [#tpu.dimension_semantics<parallel>], iteration_bounds = array<i64: 1>, scalar_prefetch = 0 : i64, scratch_operands = 0 : i64, tpu.core_type = #tpu.core_type<tc>, window_params = [{transform_indices = @transform_0, window_bounds = array<i64: 16, 136>}, {pipeline_mode = #tpu.pipeline_mode<synchronous>, transform_indices = @transform_1, window_bounds = array<i64: 136, 256>}, {pipeline_mode = #tpu.pipeline_mode<synchronous>, transform_indices = @transform_2, window_bounds = array<i64: 256, 128>}, {pipeline_mode = #tpu.pipeline_mode<synchronous>, transform_indices = @transform_3, window_bounds = array<i64: 1, 128>}, {transform_indices = @transform_4, window_bounds = array<i64: 16, 128>}]} {
    %c0 = arith.constant 0 : index
    %c0_0 = arith.constant 0 : index
    %0 = vector.load %arg1[%c0, %c0_0] : memref<16x136xf32, #tpu.memory_space<vmem>>, vector<16x136xf32>
    %c0_1 = arith.constant 0 : index
    %c0_2 = arith.constant 0 : index
    %1 = vector.load %arg2[%c0_1, %c0_2] : memref<136x256xf32, #tpu.memory_space<vmem>>, vector<136x256xf32>
    %cst = arith.constant dense<0.000000e+00> : vector<16x256xf32>
    %2 = tpu.matmul %0, %1, %cst {dimension_numbers = #tpu.dot_dimension_numbers<[1], [0], [0], [1], [0, 0, 1, 1], [], []>} : vector<16x136xf32>, vector<136x256xf32>, vector<16x256xf32> -> vector<16x256xf32>
    %3 = math.tanh %2 : vector<16x256xf32>
    %c0_3 = arith.constant 0 : index
    %c0_4 = arith.constant 0 : index
    %4 = vector.load %arg3[%c0_3, %c0_4] : memref<256x128xf32, #tpu.memory_space<vmem>>, vector<256x128xf32>
    %cst_5 = arith.constant dense<0.000000e+00> : vector<16x128xf32>
    %5 = tpu.matmul %3, %4, %cst_5 {dimension_numbers = #tpu.dot_dimension_numbers<[1], [0], [0], [1], [0, 0, 1, 1], [], []>} : vector<16x256xf32>, vector<256x128xf32>, vector<16x128xf32> -> vector<16x128xf32>
    %c0_6 = arith.constant 0 : index
    %c0_7 = arith.constant 0 : index
    %6 = vector.load %arg4[%c0_6, %c0_7] : memref<1x128xf32, #tpu.memory_space<vmem>>, vector<1x128xf32>
    %7 = vector.broadcast %6 : vector<1x128xf32> to vector<16x128xf32>
    %8 = arith.addf %5, %7 : vector<16x128xf32>
    %9 = vector.extract_strided_slice %0 {offsets = [0, 0], sizes = [16, 128], strides = [1, 1]} : vector<16x136xf32> to vector<16x128xf32>
    %10 = vector.extract_strided_slice %0 {offsets = [0, 128], sizes = [16, 1], strides = [1, 1]} : vector<16x136xf32> to vector<16x1xf32>
    %cst_8 = arith.constant 2.000000e-03 : f32
    %11 = vector.broadcast %cst_8 : f32 to vector<16x1xf32>
    %12 = arith.subf %10, %11 : vector<16x1xf32>
    %13 = arith.mulf %12, %12 : vector<16x1xf32>
    %cst_9 = arith.constant 2.500000e-01 : f32
    %14 = vector.broadcast %cst_9 : f32 to vector<16x1xf32>
    %15 = arith.addf %13, %14 : vector<16x1xf32>
    %16 = tpu.reciprocal %15 {approx = true} : vector<16x1xf32> -> vector<16x1xf32>
    %17 = arith.mulf %15, %16 : vector<16x1xf32>
    %cst_10 = arith.constant 2.000000e+00 : f32
    %18 = vector.broadcast %cst_10 : f32 to vector<16x1xf32>
    %19 = arith.subf %18, %17 : vector<16x1xf32>
    %20 = arith.mulf %16, %19 : vector<16x1xf32>
    %cst_11 = arith.constant 2.500000e-01 : f32
    %21 = vector.broadcast %cst_11 : f32 to vector<16x1xf32>
    %22 = arith.mulf %21, %20 : vector<16x1xf32>
    %cst_12 = arith.constant 5.000000e-01 : f32
    %23 = vector.broadcast %cst_12 : f32 to vector<16x1xf32>
    %24 = arith.mulf %23, %12 : vector<16x1xf32>
    %25 = arith.mulf %10, %10 : vector<16x1xf32>
    %cst_13 = arith.constant 2.500000e-01 : f32
    %26 = vector.broadcast %cst_13 : f32 to vector<16x1xf32>
    %27 = arith.addf %25, %26 : vector<16x1xf32>
    %28 = math.rsqrt %27 : vector<16x1xf32>
    %29 = arith.mulf %24, %28 : vector<16x1xf32>
    %30 = vector.broadcast %29 : vector<16x1xf32> to vector<16x128xf32>
    %31 = arith.mulf %30, %8 : vector<16x128xf32>
    %32 = vector.broadcast %22 : vector<16x1xf32> to vector<16x128xf32>
    %33 = arith.mulf %32, %9 : vector<16x128xf32>
    %34 = arith.addf %31, %33 : vector<16x128xf32>
    %c0_14 = arith.constant 0 : index
    %c0_15 = arith.constant 0 : index
    %35 = vector.load %arg5[%c0_14, %c0_15] : memref<16x128xf32, #tpu.memory_space<vmem>>, vector<16x128xf32>
    tpu.vector_store %arg5[%c0_14, %c0_15], %34 {strides = array<i32>} : memref<16x128xf32, #tpu.memory_space<vmem>>, vector<16x128xf32>,
    return
  }
  func.func @transform_0(%arg0: i32) -> (i32, i32) {
    %c0_i32 = arith.constant 0 : i32
    %c0_i32_0 = arith.constant 0 : i32
    return %arg0, %c0_i32 : i32, i32
  }
  func.func @transform_1(%arg0: i32) -> (i32, i32) {
    %c0_i32 = arith.constant 0 : i32
    %c0_i32_0 = arith.constant 0 : i32
    %c0_i32_1 = arith.constant 0 : i32
    return %c0_i32, %c0_i32_0 : i32, i32
  }
  func.func @transform_2(%arg0: i32) -> (i32, i32) {
    %c0_i32 = arith.constant 0 : i32
    %c0_i32_0 = arith.constant 0 : i32
    %c0_i32_1 = arith.constant 0 : i32
    return %c0_i32, %c0_i32_0 : i32, i32
  }
  func.func @transform_3(%arg0: i32) -> (i32, i32) {
    %c0_i32 = arith.constant 0 : i32
    %c0_i32_0 = arith.constant 0 : i32
    %c0_i32_1 = arith.constant 0 : i32
    return %c0_i32, %c0_i32_0 : i32, i32
  }
  func.func @transform_4(%arg0: i32) -> (i32, i32) {
    %c0_i32 = arith.constant 0 : i32
    %c0_i32_0 = arith.constant 0 : i32
    return %arg0, %c0_i32 : i32, i32
  }
}

</mosaic_0001>

<llo_original>
// kernel: tpu_custom_call.1
$region0: #{tpu_custom_call.1}
  #allocation0 [shape = 'u32[]', space=smem, size = 0x4, offset = 0x4, fixed_abs, tag = 'smem constant byte address 0x4 - core index']
  #allocation1 [shape = 'u32[72,128]{1,0:T(1,128)}', space=vmem, size = 0x9000, scoped, tag = 'internal scratch']
  %s0 = inlined_call_operand.hbm [shape: f32[16,136], index: 0, kind: input, shape index: {}]
  %s1 = inlined_call_operand.hbm [shape: f32[136,256], index: 1, kind: input, shape index: {}]
  %s2 = inlined_call_operand.hbm [shape: f32[256,128], index: 2, kind: input, shape index: {}]
  %s3 = inlined_call_operand.vmem [shape: f32[1,128], index: 3, kind: input, shape index: {}]
  %s4 = inlined_call_operand.hbm [shape: f32[16,128], index: 4, kind: output, shape index: {}]
  %s5 = sld [smem:[#allocation0]]
  $region38: #{tpu_custom_call.1} parent=0
    _
  %s7 = ssub.s32 1, %s5
  %s8 = scalar_select 0, %s7, %s5
  $region1: #{tpu_custom_call.1} parent=0
    #allocation2 [shape = 'u8[16384]{0}', space=vmem, size = 0x4000, scoped, tag = 'input window, operand 0, single buffered']
    #allocation3 [shape = 's32[1]{0}', space=sflag, size = 0x4, scoped, tag = 'scoped memory for tpu_custom_call.1']
    #allocation4 [shape = 's32[1]{0}', space=sflag, size = 0x4, scoped, tag = 'scoped memory for tpu_custom_call.1']
    #allocation5 [shape = 'u8[139264]{0}', space=vmem, size = 0x22000, scoped, tag = 'input window, operand 1, single buffered']
    #allocation6 [shape = 's32[1]{0}', space=sflag, size = 0x4, scoped, tag = 'scoped memory for tpu_custom_call.1']
    #allocation7 [shape = 'u8[131072]{0}', space=vmem, size = 0x20000, scoped, tag = 'input window, operand 2, single buffered']
    #allocation8 [shape = 'u8[8192]{0}', space=vmem, size = 0x2000, scoped, tag = 'output window, operand 0, single buffered']
    %9 = vsyncpa [#allocation3], 0
    %10 = vsyncpa [#allocation6], 0
    %11 = vsyncpa [#allocation4], 0
    // Predicated region
    $region2: #{tpu_custom_call.1} parent=1 // pred_check
      _
    $region3: #{tpu_custom_call.1} parent=1 // pred_check_branch
      %13 = sbr.rel (0) target = $region5
    $region4: #{tpu_custom_call.1} parent=1 // pred_region
      %15 = vsyncadd [#allocation3], 0
      %s16 = sshll.u32 %s0, 4
      %s17 = int_to_ptr.hbm [resolvable:$true] %s16
      %s18 = sshll.u32 [#allocation2], 4
      %s19 = int_to_ptr.vmem [resolvable:$true] %s18
      %24 = dma.hbm_to_vmem [thread:$0]  %s17, 512, %s19, [#allocation3], 256, 256, 16
    $region5: #{tpu_custom_call.1} parent=1 // pred_fallthru
      _
    // Predicated region
    $region6: #{tpu_custom_call.1} parent=1 // pred_check
      _
    $region7: #{tpu_custom_call.1} parent=1 // pred_check_branch
      %26 = sbr.rel (0) target = $region9
    $region8: #{tpu_custom_call.1} parent=1 // pred_region
      %28 = vsyncadd [#allocation6], 0
      %s29 = sshll.u32 %s1, 4
      %s30 = int_to_ptr.hbm [resolvable:$true] %s29
      %s31 = sshll.u32 [#allocation5], 4
      %s32 = int_to_ptr.vmem [resolvable:$true] %s31
      %37 = dma.hbm_to_vmem [thread:$0]  %s30, 4352, %s32, [#allocation6], 256, 256, 16
    $region9: #{tpu_custom_call.1} parent=1 // pred_fallthru
      _
    // Predicated region
    $region10: #{tpu_custom_call.1} parent=1 // pred_check
      _
    $region11: #{tpu_custom_call.1} parent=1 // pred_check_branch
      %39 = sbr.rel (0) target = $region13
    $region12: #{tpu_custom_call.1} parent=1 // pred_region
      %41 = vsyncadd [#allocation6], 0
      %s42 = sshll.u32 %s2, 4
      %s43 = int_to_ptr.hbm [resolvable:$true] %s42
      %s44 = sshll.u32 [#allocation7], 4
      %s45 = int_to_ptr.vmem [resolvable:$true] %s44
      %50 = dma.hbm_to_vmem [thread:$0]  %s43, 4096, %s45, [#allocation6], 128, 128, 8
    $region13: #{tpu_custom_call.1} parent=1 // pred_fallthru
      _
    // Predicated region
    $region14: #{tpu_custom_call.1} parent=1 // pred_check
      _
    $region15: #{tpu_custom_call.1} parent=1 // pred_check_branch
      %52 = sbr.rel (0) target = $region17
    $region16: #{tpu_custom_call.1} parent=1 // pred_region
      _
    $region17: #{tpu_custom_call.1} parent=1 // pred_fallthru
      _
    // Predicated region
    $region18: #{tpu_custom_call.1} parent=1 // pred_check
      _
    $region19: #{tpu_custom_call.1} parent=1 // pred_check_branch
      %54 = sbr.rel (0) target = $region21
    $region20: #{tpu_custom_call.1} parent=1 // pred_region
      %56 = dma.done [#allocation3], 512
    $region21: #{tpu_custom_call.1} parent=1 // pred_fallthru
      _
    // Predicated region
    $region22: #{tpu_custom_call.1} parent=1 // pred_check
      _
    $region23: #{tpu_custom_call.1} parent=1 // pred_check_branch
      %58 = sbr.rel (0) target = $region25
    $region24: #{tpu_custom_call.1} parent=1 // pred_region
      %60 = dma.done [#allocation6], 4352
    $region25: #{tpu_custom_call.1} parent=1 // pred_fallthru
      _
    // Predicated region
    $region26: #{tpu_custom_call.1} parent=1 // pred_check
      _
    $region27: #{tpu_custom_call.1} parent=1 // pred_check_branch
      %62 = sbr.rel (0) target = $region29
    $region28: #{tpu_custom_call.1} parent=1 // pred_region
      %64 = dma.done [#allocation6], 4096
    $region29: #{tpu_custom_call.1} parent=1 // pred_fallthru
      _
    %v65 = vld [vmem:[#allocation2] sm:$0xff]
    %v66 = vld [vmem:[#allocation2 + $0x8] sm:$0xff]
    %v67 = vld [vmem:[#allocation2 + $0x10] sm:$0xff]
    %v68 = vld [vmem:[#allocation2 + $0x18] sm:$0xff]
    %v69 = vld [vmem:[#allocation5] sm:$0xff]
    %v70 = vld [vmem:[#allocation5 + $0x8] sm:$0xff]
    %v71 = vld [vmem:[#allocation5 + $0x10] sm:$0xff]
    %v72 = vld [vmem:[#allocation5 + $0x18] sm:$0xff]
    %v73 = vld [vmem:[#allocation5 + $0x20] sm:$0xff]
    %v74 = vld [vmem:[#allocation5 + $0x28] sm:$0xff]
    %v75 = vld [vmem:[#allocation5 + $0x30] sm:$0xff]
    %v76 = vld [vmem:[#allocation5 + $0x38] sm:$0xff]
    %v77 = vld [vmem:[#allocation5 + $0x40] sm:$0xff]
    %v78 = vld [vmem:[#allocation5 + $0x48] sm:$0xff]
    %v79 = vld [vmem:[#allocation5 + $0x50] sm:$0xff]
    %v80 = vld [vmem:[#allocation5 + $0x58] sm:$0xff]
    %v81 = vld [vmem:[#allocation5 + $0x60] sm:$0xff]
    %v82 = vld [vmem:[#allocation5 + $0x68] sm:$0xff]
    %v83 = vld [vmem:[#allocation5 + $0x70] sm:$0xff]
    %v84 = vld [vmem:[#allocation5 + $0x78] sm:$0xff]
    %v85 = vld [vmem:[#allocation5 + $0x80] sm:$0xff]
    %v86 = vld [vmem:[#allocation5 + $0x88] sm:$0xff]
    %v87 = vld [vmem:[#allocation5 + $0x90] sm:$0xff]
    %v88 = vld [vmem:[#allocation5 + $0x98] sm:$0xff]
    %v89 = vld [vmem:[#allocation5 + $0xa0] sm:$0xff]
    %v90 = vld [vmem:[#allocation5 + $0xa8] sm:$0xff]
    %v91 = vld [vmem:[#allocation5 + $0xb0] sm:$0xff]
    %v92 = vld [vmem:[#allocation5 + $0xb8] sm:$0xff]
    %v93 = vld [vmem:[#allocation5 + $0xc0] sm:$0xff]
    %v94 = vld [vmem:[#allocation5 + $0xc8] sm:$0xff]
    %v95 = vld [vmem:[#allocation5 + $0xd0] sm:$0xff]
    %v96 = vld [vmem:[#allocation5 + $0xd8] sm:$0xff]
    %v97 = vld [vmem:[#allocation5 + $0xe0] sm:$0xff]
    %v98 = vld [vmem:[#allocation5 + $0xe8] sm:$0xff]
    %v99 = vld [vmem:[#allocation5 + $0xf0] sm:$0xff]
    %v100 = vld [vmem:[#allocation5 + $0xf8] sm:$0xff]
    %v101 = vld [vmem:[#allocation5 + $0x100] sm:$0xff]
    %v102 = vld [vmem:[#allocation5 + $0x108] sm:$0xff]
    %vm103 = vcmask 64512
    %v105 = vsel %vm103, %v66, 0
    %v108 = vsel %vm103, %v68, 0
    %110 = vmatpush.msra.mxu0 %v99
    %111 = vmatpush.msra.mxu0 %v97
    %112 = vmatpush.msra.mxu0 %v95
    %113 = vmatpush.msra.mxu0 %v93
    %114 = vmatpush.msra.mxu0 %v91
    %115 = vmatpush.msra.mxu0 %v89
    %116 = vmatpush.msra.mxu0 %v87
    %117 = vmatpush.msra.mxu0 %v85
    %118 = vmatpush.msra.mxu0 %v83
    %119 = vmatpush.msra.mxu0 %v81
    %120 = vmatpush.msra.mxu0 %v79
    %121 = vmatpush.msra.mxu0 %v77
    %122 = vmatpush.msra.mxu0 %v75
    %123 = vmatpush.msra.mxu0 %v73
    %124 = vmatpush.msra.mxu0 %v71
    %125 = vmatpush.msra.mxu0 %v69
    %126 = vmatmul.f32.gmra.mxu0 %v65
    %v127 = vpop.f32.mrf.mxu0
    %v128 = vadd.f32 0.0, %v127
    %129 = vmatmul.f32.gmra.mxu0 %v67
    %v130 = vpop.f32.mrf.mxu0
    %v131 = vadd.f32 0.0, %v130
    %132 = vdwg.mxu0
    %133 = vmatpush.msra.mxu0 0.0
    %134 = vmatpush.msra.mxu0 0.0
    %135 = vmatpush.msra.mxu0 0.0
    %136 = vmatpush.msra.mxu0 0.0
    %137 = vmatpush.msra.mxu0 0.0
    %138 = vmatpush.msra.mxu0 0.0
    %139 = vmatpush.msra.mxu0 0.0
    %140 = vmatpush.msra.mxu0 0.0
    %141 = vmatpush.msra.mxu0 0.0
    %142 = vmatpush.msra.mxu0 0.0
    %143 = vmatpush.msra.mxu0 0.0
    %144 = vmatpush.msra.mxu0 0.0
    %145 = vmatpush.msra.mxu0 0.0
    %146 = vmatpush.msra.mxu0 0.0
    %147 = vmatpush.msra.mxu0 0.0
    %148 = vmatpush.msra.mxu0 %v101
    %149 = vmatmul.f32.gmra.mxu0 %v105
    %v150 = vpop.f32.mrf.mxu0
    %v151 = vadd.f32 %v128, %v150
    %152 = vmatmul.f32.gmra.mxu0 %v108
    %v153 = vpop.f32.mrf.mxu0
    %v154 = vadd.f32 %v131, %v153
    %155 = vdwg.mxu0
    %156 = vmatpush.msra.mxu0 %v100
    %157 = vmatpush.msra.mxu0 %v98
    %158 = vmatpush.msra.mxu0 %v96
    %159 = vmatpush.msra.mxu0 %v94
    %160 = vmatpush.msra.mxu0 %v92
    %161 = vmatpush.msra.mxu0 %v90
    %162 = vmatpush.msra.mxu0 %v88
    %163 = vmatpush.msra.mxu0 %v86
    %164 = vmatpush.msra.mxu0 %v84
    %165 = vmatpush.msra.mxu0 %v82
    %166 = vmatpush.msra.mxu0 %v80
    %167 = vmatpush.msra.mxu0 %v78
    %168 = vmatpush.msra.mxu0 %v76
    %169 = vmatpush.msra.mxu0 %v74
    %170 = vmatpush.msra.mxu0 %v72
    %171 = vmatpush.msra.mxu0 %v70
    %172 = vmatmul.f32.gmra.mxu0 %v65
    %v173 = vpop.f32.mrf.mxu0
    %v174 = vadd.f32 0.0, %v173
    %175 = vmatmul.f32.gmra.mxu0 %v67
    %v176 = vpop.f32.mrf.mxu0
    %v177 = vadd.f32 0.0, %v176
    %178 = vdwg.mxu0
    %179 = vmatpush.msra.mxu0 0.0
    %180 = vmatpush.msra.mxu0 0.0
    %181 = vmatpush.msra.mxu0 0.0
    %182 = vmatpush.msra.mxu0 0.0
    %183 = vmatpush.msra.mxu0 0.0
    %184 = vmatpush.msra.mxu0 0.0
    %185 = vmatpush.msra.mxu0 0.0
    %186 = vmatpush.msra.mxu0 0.0
    %187 = vmatpush.msra.mxu0 0.0
    %188 = vmatpush.msra.mxu0 0.0
    %189 = vmatpush.msra.mxu0 0.0
    %190 = vmatpush.msra.mxu0 0.0
    %191 = vmatpush.msra.mxu0 0.0
    %192 = vmatpush.msra.mxu0 0.0
    %193 = vmatpush.msra.mxu0 0.0
    %194 = vmatpush.msra.mxu0 %v102
    %195 = vmatmul.f32.gmra.mxu0 %v105
    %v196 = vpop.f32.mrf.mxu0
    %v197 = vadd.f32 %v174, %v196
    %198 = vmatmul.f32.gmra.mxu0 %v108
    %v199 = vpop.f32.mrf.mxu0
    %v200 = vadd.f32 %v177, %v199
    %201 = vdwg.mxu0
    %v202 = vtanh.pop %v151
    %v203 = vtanh.pop %v197
    %v204 = vtanh.pop %v154
    %v205 = vtanh.pop %v200
    %v206 = vld [vmem:[#allocation7] sm:$0xff]
    %v207 = vld [vmem:[#allocation7 + $0x8] sm:$0xff]
    %v208 = vld [vmem:[#allocation7 + $0x10] sm:$0xff]
    %v209 = vld [vmem:[#allocation7 + $0x18] sm:$0xff]
    %v210 = vld [vmem:[#allocation7 + $0x20] sm:$0xff]
    %v211 = vld [vmem:[#allocation7 + $0x28] sm:$0xff]
    %v212 = vld [vmem:[#allocation7 + $0x30] sm:$0xff]
    %v213 = vld [vmem:[#allocation7 + $0x38] sm:$0xff]
    %v214 = vld [vmem:[#allocation7 + $0x40] sm:$0xff]
    %v215 = vld [vmem:[#allocation7 + $0x48] sm:$0xff]
    %v216 = vld [vmem:[#allocation7 + $0x50] sm:$0xff]
    %v217 = vld [vmem:[#allocation7 + $0x58] sm:$0xff]
    %v218 = vld [vmem:[#allocation7 + $0x60] sm:$0xff]
    %v219 = vld [vmem:[#allocation7 + $0x68] sm:$0xff]
    %v220 = vld [vmem:[#allocation7 + $0x70] sm:$0xff]
    %v221 = vld [vmem:[#allocation7 + $0x78] sm:$0xff]
    %v222 = vld [vmem:[#allocation7 + $0x80] sm:$0xff]
    %v223 = vld [vmem:[#allocation7 + $0x88] sm:$0xff]
    %v224 = vld [vmem:[#allocation7 + $0x90] sm:$0xff]
    %v225 = vld [vmem:[#allocation7 + $0x98] sm:$0xff]
    %v226 = vld [vmem:[#allocation7 + $0xa0] sm:$0xff]
    %v227 = vld [vmem:[#allocation7 + $0xa8] sm:$0xff]
    %v228 = vld [vmem:[#allocation7 + $0xb0] sm:$0xff]
    %v229 = vld [vmem:[#allocation7 + $0xb8] sm:$0xff]
    %v230 = vld [vmem:[#allocation7 + $0xc0] sm:$0xff]
    %v231 = vld [vmem:[#allocation7 + $0xc8] sm:$0xff]
    %v232 = vld [vmem:[#allocation7 + $0xd0] sm:$0xff]
    %v233 = vld [vmem:[#allocation7 + $0xd8] sm:$0xff]
    %v234 = vld [vmem:[#allocation7 + $0xe0] sm:$0xff]
    %v235 = vld [vmem:[#allocation7 + $0xe8] sm:$0xff]
    %v236 = vld [vmem:[#allocation7 + $0xf0] sm:$0xff]
    %v237 = vld [vmem:[#allocation7 + $0xf8] sm:$0xff]
    %v238 = vld [vmem:[%s3] sm:$0x1]
    %v240 = vperm.slane %v238, 0
    %242 = vmatpush.msra.mxu0 %v221
    %243 = vmatpush.msra.mxu0 %v220
    %244 = vmatpush.msra.mxu0 %v219
    %245 = vmatpush.msra.mxu0 %v218
    %246 = vmatpush.msra.mxu0 %v217
    %247 = vmatpush.msra.mxu0 %v216
    %248 = vmatpush.msra.mxu0 %v215
    %249 = vmatpush.msra.mxu0 %v214
    %250 = vmatpush.msra.mxu0 %v213
    %251 = vmatpush.msra.mxu0 %v212
    %252 = vmatpush.msra.mxu0 %v211
    %253 = vmatpush.msra.mxu0 %v210
    %254 = vmatpush.msra.mxu0 %v209
    %255 = vmatpush.msra.mxu0 %v208
    %256 = vmatpush.msra.mxu0 %v207
    %257 = vmatpush.msra.mxu0 %v206
    %258 = vmatmul.f32.gmra.mxu0 %v202
    %v259 = vpop.f32.mrf.mxu0
    %v260 = vadd.f32 %v240, %v259
    %261 = vmatmul.f32.gmra.mxu0 %v204
    %v262 = vpop.f32.mrf.mxu0
    %v263 = vadd.f32 %v240, %v262
    %264 = vdwg.mxu0
    %265 = vmatpush.msra.mxu0 %v237
    %266 = vmatpush.msra.mxu0 %v236
    %267 = vmatpush.msra.mxu0 %v235
    %268 = vmatpush.msra.mxu0 %v234
    %269 = vmatpush.msra.mxu0 %v233
    %270 = vmatpush.msra.mxu0 %v232
    %271 = vmatpush.msra.mxu0 %v231
    %272 = vmatpush.msra.mxu0 %v230
    %273 = vmatpush.msra.mxu0 %v229
    %274 = vmatpush.msra.mxu0 %v228
    %275 = vmatpush.msra.mxu0 %v227
    %276 = vmatpush.msra.mxu0 %v226
    %277 = vmatpush.msra.mxu0 %v225
    %278 = vmatpush.msra.mxu0 %v224
    %279 = vmatpush.msra.mxu0 %v223
    %280 = vmatpush.msra.mxu0 %v222
    %281 = vmatmul.f32.gmra.mxu0 %v203
    %v282 = vpop.f32.mrf.mxu0
    %v283 = vadd.f32 %v260, %v282
    %284 = vmatmul.f32.gmra.mxu0 %v205
    %v285 = vpop.f32.mrf.mxu0
    %v286 = vadd.f32 %v263, %v285
    %287 = vdwg.mxu0
    %v288 = vsub.f32 %v66, 0.002
    %v289 = vsub.f32 %v68, 0.002
    %v290 = vmul.f32 %v288, %v288
    %v291 = vmul.f32 %v289, %v289
    %v292 = vadd.f32 %v290, 0.25
    %v293 = vadd.f32 %v291, 0.25
    %v294 = vrcp.pop %v292
    %v295 = vrcp.pop %v293
    %v296 = vmul.f32 %v292, %v294
    %v297 = vmul.f32 %v293, %v295
    %v298 = vsub.f32 2.0, %v296
    %v299 = vsub.f32 2.0, %v297
    %v300 = vmul.f32 %v294, %v298
    %v301 = vmul.f32 %v295, %v299
    %v302 = vmul.f32 %v300, 0.25
    %v303 = vmul.f32 %v301, 0.25
    %v304 = vmul.f32 %v288, 0.5
    %v305 = vmul.f32 %v289, 0.5
    %v306 = vmul.f32 %v66, %v66
    %v307 = vmul.f32 %v68, %v68
    %v308 = vadd.f32 %v306, 0.25
    %v309 = vadd.f32 %v307, 0.25
    %v310 = vrsqrt.pop %v308
    %v311 = vmul.f32 %v310, %v308
    %v312 = vmul.f32 %v311, %v310
    %v313 = vmul.f32 0.5, %v312
    %v314 = vsub.f32 1.5, %v313
    %v315 = vmul.f32 %v310, %v314
    %vm316 = vweird.f32 %v308
    %vm317 = vweird.f32 %v310
    %vm318 = vmor %vm316, %vm317
    %v319 = vsel %vm318, %v310, %v315
    %v320 = vrsqrt.pop %v309
    %v321 = vmul.f32 %v320, %v309
    %v322 = vmul.f32 %v321, %v320
    %v323 = vmul.f32 0.5, %v322
    %v324 = vsub.f32 1.5, %v323
    %v325 = vmul.f32 %v320, %v324
    %vm326 = vweird.f32 %v309
    %vm327 = vweird.f32 %v320
    %vm328 = vmor %vm326, %vm327
    %v329 = vsel %vm328, %v320, %v325
    %v330 = vmul.f32 %v304, %v319
    %v331 = vmul.f32 %v305, %v329
    %333 = vset.pattern.permute.xlu0 0
    %334 = vperm.xlu0 %333, %v330
    %v335 = vpop.permute.xlu0 %334
    %338 = vset.pattern.permute.xlu0 0
    %339 = vperm.xlu0 %338, %v331
    %v340 = vpop.permute.xlu0 %339
    %v342 = vmul.f32 %v335, %v283
    %v343 = vmul.f32 %v340, %v286
    %345 = vset.pattern.permute.xlu0 0
    %346 = vperm.xlu0 %345, %v302
    %v347 = vpop.permute.xlu0 %346
    %350 = vset.pattern.permute.xlu0 0
    %351 = vperm.xlu0 %350, %v303
    %v352 = vpop.permute.xlu0 %351
    %v354 = vmul.f32 %v347, %v65
    %v355 = vmul.f32 %v352, %v67
    %v356 = vadd.f32 %v342, %v354
    %v357 = vadd.f32 %v343, %v355
    %358 = vst [vmem:[#allocation8] sm:$0xff] %v356
    %359 = vst [vmem:[#allocation8 + $0x8] sm:$0xff] %v357
    // Predicated region
    $region30: #{tpu_custom_call.1} parent=1 // pred_check
      _
    $region31: #{tpu_custom_call.1} parent=1 // pred_check_branch
      %361 = sbr.rel (0) target = $region33
    $region32: #{tpu_custom_call.1} parent=1 // pred_region
      %363 = vsyncadd [#allocation4], 0
      %s364 = sshll.u32 [#allocation8], 4
      %s365 = int_to_ptr.vmem [resolvable:$true] %s364
      %s366 = sshll.u32 %s4, 4
      %s367 = int_to_ptr.hbm [resolvable:$true] %s366
      %372 = dma.vmem_to_hbm [thread:$0]  %s365, 256, %s367, [#allocation4], 128, 128, 8
    $region33: #{tpu_custom_call.1} parent=1 // pred_fallthru
      _
    // Predicated region
    $region34: #{tpu_custom_call.1} parent=1 // pred_check
      _
    $region35: #{tpu_custom_call.1} parent=1 // pred_check_branch
      %374 = sbr.rel (0) target = $region37
    $region36: #{tpu_custom_call.1} parent=1 // pred_region
      %376 = dma.done [#allocation4], 256
    $region37: #{tpu_custom_call.1} parent=1 // pred_fallthru
      _
    %377 = vsyncpa [#allocation3], 1
    %378 = vsyncpa [#allocation6], 1
    %379 = vsyncpa [#allocation4], 1

</llo_original>
